<compile_context>
chip_gen: v7x
topology: tpu7x:2x2x1
jax: 0.10.0
libtpu: 0.0.40
codegen_flags: <defaults>
</compile_context>

<pallas_src>
import functools

import jax
import jax.numpy as jnp
from jax import lax
from jax.experimental import pallas as pl
from jax.experimental.pallas import tpu as pltpu


def _round_up(x, m):
    return (x + m - 1) // m * m


def _phys_block_bytes(rows, cols, itemsize):
    """VMEM bytes one (rows, cols) block really occupies after (8,128) padding."""
    return _round_up(rows, 8) * _round_up(cols, 128) * itemsize


def _vmem_capacity_bytes():
    try:
        cap = getattr(pltpu.get_tpu_info(), "vmem_capacity_bytes", None)
        if cap:
            return int(cap)
    except Exception:
        pass
    return 64 << 20  # conservative default: v7x per-TensorCore VMEM


# ---------------------------------------------------------------------------
# Path 1: resident table in VMEM; gather = chunked one-hot @ table on the MXU
# ---------------------------------------------------------------------------
def _embed_onehot_kernel(ids_ref, val_ref, tab_ref, out_ref, *, kc):
    # ids_ref: (TM, 1) int32   val_ref: (TM, 1) f32
    # tab_ref: (nfeat_pad, E) resident (single-buffered)   out_ref: (TM, E)
    tm = ids_ref.shape[0]
    nfeat_pad, emb = tab_ref.shape
    ids = ids_ref[...]
    val = val_ref[...].astype(jnp.float32)

    def chunk(c, acc):
        base = pl.multiple_of(c * kc, kc)
        cols = base + lax.broadcasted_iota(jnp.int32, (tm, kc), 1)
        onehot = (ids == cols).astype(tab_ref.dtype)          # (TM, kc)
        return acc + jnp.dot(onehot, tab_ref[pl.ds(base, kc), :],
                             preferred_element_type=jnp.float32)

    acc = jnp.zeros((tm, emb), jnp.float32)
    acc = lax.fori_loop(0, nfeat_pad // kc, chunk, acc, unroll=True)
    out_ref[...] = (acc * val).astype(out_ref.dtype)


# ---------------------------------------------------------------------------
# Path 2: table stays in HBM; per-row DMA gather into a VMEM buffer
# ---------------------------------------------------------------------------
def _embed_gather_kernel(ids_smem, val_ref, tab_hbm, out_ref, buf, sem):
    # ids_smem: (N_pad,) int32 in SMEM (scalar prefetch)
    # val_ref: (TM, 1) f32   tab_hbm: (nfeat, E) in HBM   out_ref: (TM, E)
    # buf: (TM, E) VMEM gather buffer   sem: (1,) DMA semaphore
    tm = val_ref.shape[0]
    base = pl.program_id(0) * tm

    @pl.loop(0, tm)
    def _issue(r):
        row = ids_smem[base + r]
        pltpu.make_async_copy(tab_hbm.at[row], buf.at[r], sem.at[0]).start()

    @pl.loop(0, tm)
    def _drain(r):
        pltpu.make_async_copy(tab_hbm.at[0], buf.at[r], sem.at[0]).wait()

    out_ref[...] = (buf[...].astype(jnp.float32)
                    * val_ref[...].astype(jnp.float32)).astype(out_ref.dtype)


def embedding_forward(ids, values, table, *, tile_rows=256, k_chunk=128,
                      max_onehot_vocab=1024, force_gather=False):
    """ids: (B, F) int, values: (B, F) float, table: (nfeat, E) -> (B, F, E)."""
    B, F = ids.shape
    nfeat, E = table.shape
    N = B * F
    its = jnp.dtype(table.dtype).itemsize
    out_dtype = table.dtype

    # Balanced tiling: TM multiple of 8, N_pad within 8 rows per tile of N,
    # and >= 2 grid steps whenever possible so both v7x TensorCores get work.
    n_tiles = pl.cdiv(N, tile_rows)
    if n_tiles == 1 and N > 8:
        n_tiles = 2
    TM = _round_up(pl.cdiv(N, n_tiles), 8)
    N_pad = n_tiles * TM

    # torch.nn.Embedding raises on out-of-range ids; here we clip (jnp.take
    # semantics) so padded / bad rows never read outside the table.
    ids_flat = jnp.clip(ids.reshape(N).astype(jnp.int32), 0, nfeat - 1)
    vals_flat = values.reshape(N).astype(jnp.float32)
    if N_pad != N:
        ids_flat = jnp.pad(ids_flat, (0, N_pad - N))        # row 0 is valid
        vals_flat = jnp.pad(vals_flat, (0, N_pad - N))       # scaled by 0
    vals_2d = vals_flat.reshape(N_pad, 1)

    vmem_cap = _vmem_capacity_bytes()

    # ---- resident one-hot path sizing -------------------------------------
    kc = min(k_chunk, _round_up(nfeat, 8))
    nfeat_pad = _round_up(nfeat, kc)
    try:  # single-buffer the resident table: its block index never changes
        tab_spec = pl.BlockSpec((nfeat_pad, E), lambda i: (0, 0),
                                pipeline_mode=pl.Buffered(1))
        table_bufs = 1
    except (TypeError, AttributeError):    # older jax without pipeline_mode
        tab_spec = pl.BlockSpec((nfeat_pad, E), lambda i: (0, 0))
        table_bufs = 2

    onehot_vmem = (table_bufs * _phys_block_bytes(nfeat_pad, E, its)
                   + 4 * _phys_block_bytes(TM, 1, 4)       # ids+values, 2 bufs
                   + 2 * _phys_block_bytes(TM, E, its)     # output, 2 bufs
                   + _phys_block_bytes(TM, kc, 4)          # live one-hot chunk
                   + _phys_block_bytes(TM, E, 4)           # f32 accumulator
                   + (2 << 20))                            # headroom

    use_onehot = (not force_gather and nfeat <= max_onehot_vocab
                  and onehot_vmem <= int(0.7 * vmem_cap))

    if use_onehot:
        tab = table
        if nfeat_pad != nfeat:
            tab = jnp.pad(table, ((0, nfeat_pad - nfeat), (0, 0)))
        ids_2d = ids_flat.reshape(N_pad, 1)
        cost = pl.CostEstimate(
            flops=2 * N_pad * nfeat_pad * E + N_pad * E,
            transcendentals=0,
            bytes_accessed=N_pad * 8 + nfeat_pad * E * its + N_pad * E * its)
        out_flat = pl.pallas_call(
            functools.partial(_embed_onehot_kernel, kc=kc),
            out_shape=jax.ShapeDtypeStruct((N_pad, E), out_dtype),
            grid=(n_tiles,),
            in_specs=[pl.BlockSpec((TM, 1), lambda i: (i, 0)),   # ids tile
                      pl.BlockSpec((TM, 1), lambda i: (i, 0)),   # values tile
                      tab_spec],                                 # resident table
            out_specs=pl.BlockSpec((TM, E), lambda i: (i, 0)),
            compiler_params=pltpu.CompilerParams(
                dimension_semantics=("parallel",),
                vmem_limit_bytes=int(min(max(onehot_vmem, 32 << 20),
                                         int(0.9 * vmem_cap)))),
            cost_estimate=cost,
        )(ids_2d, vals_2d, tab)
    else:
        gather_vmem = (_phys_block_bytes(TM, E, its)         # gather buffer
                       + 2 * _phys_block_bytes(TM, 1, 4)     # values, 2 bufs
                       + 2 * _phys_block_bytes(TM, E, its)   # output, 2 bufs
                       + (2 << 20))
        cost = pl.CostEstimate(
            flops=N_pad * E,
            transcendentals=0,
            bytes_accessed=N_pad * 8 + 2 * N_pad * E * its)
        grid_spec = pltpu.PrefetchScalarGridSpec(
            num_scalar_prefetch=1,                           # ids -> SMEM
            grid=(n_tiles,),
            in_specs=[pl.BlockSpec((TM, 1), lambda i, ids: (i, 0)),  # values
                      pl.BlockSpec(memory_space=pl.ANY)],            # table HBM
            out_specs=pl.BlockSpec((TM, E), lambda i, ids: (i, 0)),
            scratch_shapes=[pltpu.VMEM((TM, E), table.dtype),
                            pltpu.SemaphoreType.DMA((1,))])
        out_flat = pl.pallas_call(
            _embed_gather_kernel,
            out_shape=jax.ShapeDtypeStruct((N_pad, E), out_dtype),
            grid_spec=grid_spec,
            compiler_params=pltpu.CompilerParams(
                dimension_semantics=("parallel",),
                vmem_limit_bytes=int(min(max(gather_vmem, 32 << 20),
                                         int(0.9 * vmem_cap)))),
            cost_estimate=cost,
        )(ids_flat, vals_2d, table)

    return out_flat[:N].reshape(B, F, E)


def _reference(ids, values, table):
    return jnp.take(table, ids, axis=0) * values[..., None]


if __name__ == "__main__":
    # Module hyper-params (small, consistent with the forward pass).
    nfield, nfeat, nemb = 8, 64, 32
    batch = 2

    key = jax.random.PRNGKey(0)
    k_tab, k_id, k_val = jax.random.split(key, 3)

    # nn.Embedding(nfeat, nemb).weight with xavier_uniform_ init.
    bound = (6.0 / (nfeat + nemb)) ** 0.5
    table = jax.random.uniform(k_tab, (nfeat, nemb), jnp.float32, -bound, bound)

    ids = jax.random.randint(k_id, (batch, nfield), 0, nfeat, dtype=jnp.int32)
    values = jax.random.uniform(k_val, (batch, nfield), dtype=jnp.float32)

    # Check 1: small batch (grid is still split in 2 for the second TC).
    out = jax.block_until_ready(embedding_forward(ids, values, table))
    ref = _reference(ids, values, table)
    assert out.shape == (batch, nfield, nemb)
    assert jnp.allclose(out, ref, atol=1e-6, rtol=1e-6)

    # Check 2: multi-tile grid, balanced tiling + row-padding path.
    k_id2, k_val2 = jax.random.split(jax.random.PRNGKey(1))
    ids2 = jax.random.randint(k_id2, (70, nfield), 0, nfeat, dtype=jnp.int32)
    values2 = jax.random.uniform(k_val2, (70, nfield), dtype=jnp.float32)
    out2 = jax.block_until_ready(embedding_forward(ids2, values2, table))
    ref2 = _reference(ids2, values2, table)
    assert out2.shape == (70, nfield, nemb)
    assert jnp.allclose(out2, ref2, atol=1e-6, rtol=1e-6)

    # Check 3: force the large-vocab DMA-gather fallback path on the same data.
    out3 = jax.block_until_ready(
        embedding_forward(ids2, values2, table, force_gather=True))
    assert jnp.allclose(out3, ref2, atol=1e-6, rtol=1e-6)

    print("KERNEL_OK")
</pallas_src>

<mosaic_0001>
module attributes {stable_mosaic.version = 11 : i64} {
  func.func @_embed_onehot_kernel(%arg0: i32, %arg1: memref<8x1xi32, #tpu.memory_space<vmem>>, %arg2: memref<8x1xf32, #tpu.memory_space<vmem>>, %arg3: memref<64x32xf32, #tpu.memory_space<vmem>>, %arg4: memref<8x32xf32, #tpu.memory_space<vmem>>) attributes {dimension_semantics = [#tpu.dimension_semantics<parallel>], iteration_bounds = array<i64: 2>, scalar_prefetch = 0 : i64, scratch_operands = 0 : i64, tpu.core_type = #tpu.core_type<tc>, window_params = [{transform_indices = @transform_0, window_bounds = array<i64: 8, 1>}, {transform_indices = @transform_1, window_bounds = array<i64: 8, 1>}, {pipeline_mode = #tpu.pipeline_mode<synchronous>, transform_indices = @transform_2, window_bounds = array<i64: 64, 32>}, {transform_indices = @transform_3, window_bounds = array<i64: 8, 32>}]} {
    %c0 = arith.constant 0 : index
    %c0_0 = arith.constant 0 : index
    %0 = vector.load %arg1[%c0, %c0_0] : memref<8x1xi32, #tpu.memory_space<vmem>>, vector<8x1xi32>
    %c0_1 = arith.constant 0 : index
    %c0_2 = arith.constant 0 : index
    %1 = vector.load %arg2[%c0_1, %c0_2] : memref<8x1xf32, #tpu.memory_space<vmem>>, vector<8x1xf32>
    %cst = arith.constant 0.000000e+00 : f32
    %2 = vector.broadcast %cst : f32 to vector<8x32xf32>
    %c0_i32 = arith.constant 0 : i32
    %c64_i32 = arith.constant 64 : i32
    %3 = arith.muli %c0_i32, %c64_i32 : i32
    %4 = tpu.assume_multiple %3, 64 : i32
    %5 = tpu.iota {dimensions = array<i32: 1>} : vector<8x64xi32>
    %6 = vector.broadcast %4 : i32 to vector<8x64xi32>
    %7 = arith.addi %6, %5 : vector<8x64xi32>
    %8 = vector.broadcast %0 : vector<8x1xi32> to vector<8x64xi32>
    %9 = arith.cmpi eq, %8, %7 : vector<8x64xi32>
    %10 = arith.extui %9 : vector<8x64xi1> to vector<8x64xi32>
    %11 = arith.sitofp %10 : vector<8x64xi32> to vector<8x64xf32>
    %12 = arith.index_cast %4 : i32 to index
    %c0_3 = arith.constant 0 : index
    %13 = vector.load %arg3[%12, %c0_3] : memref<64x32xf32, #tpu.memory_space<vmem>>, vector<64x32xf32>
    %cst_4 = arith.constant dense<0.000000e+00> : vector<8x32xf32>
    %14 = tpu.matmul %11, %13, %cst_4 {dimension_numbers = #tpu.dot_dimension_numbers<[1], [0], [0], [1], [0, 0, 1, 1], [], []>} : vector<8x64xf32>, vector<64x32xf32>, vector<8x32xf32> -> vector<8x32xf32>
    %15 = arith.addf %2, %14 : vector<8x32xf32>
    %c1_i32 = arith.constant 1 : i32
    %16 = vector.broadcast %1 : vector<8x1xf32> to vector<8x32xf32>
    %17 = arith.mulf %15, %16 : vector<8x32xf32>
    %c0_5 = arith.constant 0 : index
    %c0_6 = arith.constant 0 : index
    %18 = vector.load %arg4[%c0_5, %c0_6] : memref<8x32xf32, #tpu.memory_space<vmem>>, vector<8x32xf32>
    tpu.vector_store %arg4[%c0_5, %c0_6], %17 {strides = array<i32>} : memref<8x32xf32, #tpu.memory_space<vmem>>, vector<8x32xf32>,
    return
  }
  func.func @transform_0(%arg0: i32) -> (i32, i32) {
    %c0_i32 = arith.constant 0 : i32
    %c0_i32_0 = arith.constant 0 : i32
    return %arg0, %c0_i32 : i32, i32
  }
  func.func @transform_1(%arg0: i32) -> (i32, i32) {
    %c0_i32 = arith.constant 0 : i32
    %c0_i32_0 = arith.constant 0 : i32
    return %arg0, %c0_i32 : i32, i32
  }
  func.func @transform_2(%arg0: i32) -> (i32, i32) {
    %c0_i32 = arith.constant 0 : i32
    %c0_i32_0 = arith.constant 0 : i32
    %c0_i32_1 = arith.constant 0 : i32
    return %c0_i32, %c0_i32_0 : i32, i32
  }
  func.func @transform_3(%arg0: i32) -> (i32, i32) {
    %c0_i32 = arith.constant 0 : i32
    %c0_i32_0 = arith.constant 0 : i32
    return %arg0, %c0_i32 : i32, i32
  }
}

</mosaic_0001>

<llo_original>
// kernel: tpu_custom_call.1
$region0: #{tpu_custom_call.1}
  #allocation0 [shape = 'u32[]', space=smem, size = 0x4, offset = 0x4, fixed_abs, tag = 'smem constant byte address 0x4 - core index']
  #allocation1 [shape = 'u32[144,128]{1,0:T(1,128)}', space=vmem, size = 0x12000, scoped, tag = 'internal scratch']
  %s0 = inlined_call_operand.vmem [shape: s32[16,1], index: 0, kind: input, shape index: {}]
  %s1 = inlined_call_operand.vmem [shape: f32[16,1], index: 1, kind: input, shape index: {}]
  %s2 = inlined_call_operand.vmem [shape: f32[64,32], index: 2, kind: input, shape index: {}]
  %s3 = inlined_call_operand.hbm [shape: f32[16,32], index: 3, kind: output, shape index: {}]
  %s4 = sld [smem:[#allocation0]]
  $region45: #{tpu_custom_call.1} parent=0
    _
  %s6 = ssub.s32 1, %s4
  %s7 = scalar_select 0, %s6, %s4
  $region1: #{tpu_custom_call.1} parent=0
    #allocation2 [shape = 'u8[8192]{0}', space=vmem, size = 0x2000, scoped, tag = 'output window, operand 0']
    #allocation3 [shape = 's32[2]{0}', space=sflag, size = 0x8, scoped, tag = 'scoped memory for tpu_custom_call.1']
    %8 = vsyncpa [#allocation3], 0
    %s9 = scalar_lea.sflag [#allocation3], 1
    %10 = vsyncpa %s9, 0
    loop: start=0, step=1, limit=4
    $region2: #{tpu_custom_call.1} parent=1 // loop_pre_header
      _
    $region3: #{tpu_custom_call.1} parent=1 // loop_header
      %s12 = sphi 0, %s16
      %p13 = scmp.ge.s32.totalorder %s12, 4
      %s22 = sphi 0, %s24
      %s25 = sphi 0, %s22
      %s26 = sphi 0, %s25
      %s42 = sphi 0, %s26
      %s48 = sphi 0, %s50
      %s51 = sphi 0, %s48
      %s52 = sphi 0, %s51
      %s68 = sphi 0, %s52
      %s72 = sphi 0, %s72
      %s74 = sphi 0, %s72
      %s75 = sphi 0, %s74
      %s89 = sphi 0, %s75
      %s95 = sphi 0, %s97
      %s98 = sphi 0, %s95
      %s99 = sphi 0, %s98
      %s115 = sphi 0, %s99
    $region4: #{tpu_custom_call.1} parent=1 // loop_header_branch
      %15 = sbr.rel (%p13) target = $region8
    $region5: #{tpu_custom_call.1} parent=1 // loop_body
      %s17 = ssub.s32 %s12, 1
      %s18 = ssub.s32 %s12, 2
      %s19 = sadd.s32 %s12, 1
      %s20 = ssub.s32 %s12, %s19
      %p21 = scmp.eq.s32.totalorder %s20, 0
      %s23 = sadd.s32 %s22, 1
      %s24 = scalar_select %p21, %s22, %s23
      %p27 = pneg %p21
      %p28 = scmp.eq.s32.totalorder %s12, 1
      %p29 = por %p27, %p28
      %p30 = scmp.ne.s32.totalorder %s22, %s25
      %p31 = scmp.eq.s32.totalorder %s12, 0
      %p32 = por %p30, %p31
      %p33 = scmp.ne.s32.totalorder %s22, %s25
      %p34 = scmp.eq.s32.totalorder %s17, 1
      %p35 = por %p33, %p34
      %p36 = scmp.ne.s32.totalorder %s25, %s26
      %p37 = scmp.eq.s32.totalorder %s17, 0
      %p38 = por %p36, %p37
      %p39 = scmp.ne.s32.totalorder %s25, %s26
      %p40 = scmp.eq.s32.totalorder %s18, 1
      %p41 = por %p39, %p40
      %p43 = scmp.ne.s32.totalorder %s26, %s42
      %p44 = scmp.eq.s32.totalorder %s18, 0
      %p45 = por %p43, %p44
      %s46 = ssub.s32 %s12, %s19
      %p47 = scmp.eq.s32.totalorder %s46, 0
      %s49 = sadd.s32 %s48, 1
      %s50 = scalar_select %p47, %s48, %s49
      %p53 = pneg %p47
      %p54 = scmp.eq.s32.totalorder %s12, 1
      %p55 = por %p53, %p54
      %p56 = scmp.ne.s32.totalorder %s48, %s51
      %p57 = scmp.eq.s32.totalorder %s12, 0
      %p58 = por %p56, %p57
      %p59 = scmp.ne.s32.totalorder %s48, %s51
      %p60 = scmp.eq.s32.totalorder %s17, 1
      %p61 = por %p59, %p60
      %p62 = scmp.ne.s32.totalorder %s51, %s52
      %p63 = scmp.eq.s32.totalorder %s17, 0
      %p64 = por %p62, %p63
      %p65 = scmp.ne.s32.totalorder %s51, %s52
      %p66 = scmp.eq.s32.totalorder %s18, 1
      %p67 = por %p65, %p66
      %p69 = scmp.ne.s32.totalorder %s52, %s68
      %p70 = scmp.eq.s32.totalorder %s18, 0
      %p71 = por %p69, %p70
      %s73 = sadd.s32 %s72, 1
      %p76 = scmp.eq.s32.totalorder %s12, 1
      %p77 = scmp.ne.s32.totalorder %s72, %s74
      %p78 = scmp.eq.s32.totalorder %s12, 0
      %p79 = por %p77, %p78
      %p80 = scmp.ne.s32.totalorder %s72, %s74
      %p81 = scmp.eq.s32.totalorder %s17, 1
      %p82 = por %p80, %p81
      %p83 = scmp.ne.s32.totalorder %s74, %s75
      %p84 = scmp.eq.s32.totalorder %s17, 0
      %p85 = por %p83, %p84
      %p86 = scmp.ne.s32.totalorder %s74, %s75
      %p87 = scmp.eq.s32.totalorder %s18, 1
      %p88 = por %p86, %p87
      %p90 = scmp.ne.s32.totalorder %s75, %s89
      %p91 = scmp.eq.s32.totalorder %s18, 0
      %p92 = por %p90, %p91
      %s93 = ssub.s32 %s12, %s19
      %p94 = scmp.eq.s32.totalorder %s93, 0
      %s96 = sadd.s32 %s95, 1
      %s97 = scalar_select %p94, %s95, %s96
      %p100 = pneg %p94
      %p101 = scmp.eq.s32.totalorder %s12, 1
      %p102 = por %p100, %p101
      %p103 = scmp.ne.s32.totalorder %s95, %s98
      %p104 = scmp.eq.s32.totalorder %s12, 0
      %p105 = por %p103, %p104
      %p106 = scmp.ne.s32.totalorder %s95, %s98
      %p107 = scmp.eq.s32.totalorder %s17, 1
      %p108 = por %p106, %p107
      %p109 = scmp.ne.s32.totalorder %s98, %s99
      %p110 = scmp.eq.s32.totalorder %s17, 0
      %p111 = por %p109, %p110
      %p112 = scmp.ne.s32.totalorder %s98, %s99
      %p113 = scmp.eq.s32.totalorder %s18, 1
      %p114 = por %p112, %p113
      %p116 = scmp.ne.s32.totalorder %s99, %s115
      %p117 = scmp.eq.s32.totalorder %s18, 0
      %p118 = por %p116, %p117
      %p119 = scmp.le.s32.totalorder 1, %s12
      %p120 = scmp.lt.s32.totalorder %s12, 3
      %p121 = pnand %p119, %p120
      %p122 = pneg %p121
      // Predicated region
      $region9: #{tpu_custom_call.1} parent=5 // pred_check
        _
      $region10: #{tpu_custom_call.1} parent=5 // pred_check_branch
        %124 = sbr.rel (%p121) target = $region12
      $region11: #{tpu_custom_call.1} parent=5 // pred_region
        %s125 = ssub.s32 %s12, 1
        // Predicated region
        $region13: #{tpu_custom_call.1} parent=11 // pred_check
          %p126 = pneg %p85
        $region14: #{tpu_custom_call.1} parent=11 // pred_check_branch
          %128 = sbr.rel (%p126) target = $region16
        $region15: #{tpu_custom_call.1} parent=11 // pred_region
          _
        $region16: #{tpu_custom_call.1} parent=11 // pred_fallthru
          _
      $region12: #{tpu_custom_call.1} parent=5 // pred_fallthru
        _
      %p129 = scmp.lt.s32.totalorder %s12, 2
      // Predicated region
      $region17: #{tpu_custom_call.1} parent=5 // pred_check
        %p130 = pneg %p129
      $region18: #{tpu_custom_call.1} parent=5 // pred_check_branch
        %132 = sbr.rel (%p130) target = $region20
      $region19: #{tpu_custom_call.1} parent=5 // pred_region
        // Predicated region
        $region21: #{tpu_custom_call.1} parent=19 // pred_check
          %p133 = pneg %p32
        $region22: #{tpu_custom_call.1} parent=19 // pred_check_branch
          %135 = sbr.rel (%p133) target = $region24
        $region23: #{tpu_custom_call.1} parent=19 // pred_region
          %p136 = scmp.lt.s32.totalorder %s12, 1
          %s137 = scalar_select %p136, %s12, 1
          %s138 = smul.addr %s137, 8
          %s139 = scalar_lea.vmem %s0, %s138
        $region24: #{tpu_custom_call.1} parent=19 // pred_fallthru
          _
        // Predicated region
        $region25: #{tpu_custom_call.1} parent=19 // pred_check
          %p140 = pneg %p58
        $region26: #{tpu_custom_call.1} parent=19 // pred_check_branch
          %142 = sbr.rel (%p140) target = $region28
        $region27: #{tpu_custom_call.1} parent=19 // pred_region
          %p143 = scmp.lt.s32.totalorder %s12, 1
          %s144 = scalar_select %p143, %s12, 1
          %s145 = smul.addr %s144, 8
          %s146 = scalar_lea.vmem %s1, %s145
        $region28: #{tpu_custom_call.1} parent=19 // pred_fallthru
          _
      $region20: #{tpu_custom_call.1} parent=5 // pred_fallthru
        _
      %p147 = scmp.le.s32.totalorder 1, %s12
      %p148 = scmp.lt.s32.totalorder %s12, 3
      %p149 = pnand %p147, %p148
      %p150 = pneg %p149
      // Predicated region
      $region29: #{tpu_custom_call.1} parent=5 // pred_check
        _
      $region30: #{tpu_custom_call.1} parent=5 // pred_check_branch
        %152 = sbr.rel (%p149) target = $region32
      $region31: #{tpu_custom_call.1} parent=5 // pred_region
        %s153 = ssub.s32 %s12, 1
        %p154 = scmp.lt.s32.totalorder %s17, 1
        %s155 = scalar_select %p154, %s17, 1
        %s156 = smul.addr %s155, 8
        %s157 = scalar_lea.vmem %s0, %s156
        %p158 = pneg %p38
        %p159 = pneg %p35
        %p160 = scmp.lt.s32.totalorder %s17, 1
        %s161 = scalar_select %p160, %s17, 1
        %s162 = smul.addr %s161, 8
        %s163 = scalar_lea.vmem %s1, %s162
        %p164 = pneg %p64
        %p165 = pneg %p61
        %p166 = pneg %p85
        %p167 = pneg %p82
        %p168 = pneg %p111
        %p169 = pneg %p108
        %s170 = sand.u32 %s98, 1
        %s171 = scalar_lea.sflag [#allocation3], %s170
        %s172 = sand.u32 %s98, 1
        %s173 = smul.addr %s172, 8
        %s174 = scalar_lea.vmem [#allocation2], %s173
        %p175 = scmp.lt.s32.totalorder %s17, 1
        %s176 = scalar_select %p175, %s17, 1
        %s177 = smul.addr %s176, 8
        %s178 = scalar_lea.vmem %s0, %s177
        %p179 = scmp.lt.s32.totalorder %s17, 1
        %s180 = scalar_select %p179, %s17, 1
        %s181 = smul.addr %s180, 8
        %s182 = scalar_lea.vmem %s1, %s181
        %v183 = vld [vmem:[%s178] sm:$0xff]
        %v184 = vld [vmem:[%s182] sm:$0xff]
        %v185 = vlaneseq
        %v186 = vand.u32 %v185, 127
        %v187 = vstv 0
        %v188 = vadd.s32 %v187, %v186
        %189 = vset.pattern.permute.xlu0 0
        %190 = vperm.xlu0 %189, %v183
        %v191 = vpop.permute.xlu0 %190
        %vm192 = vcmp.eq.s32.totalorder %v191, %v188
        %v193 = vsel %vm192, 1, 0
        %v194 = vcvt.s32.f32 %v193
        %v195 = vld [vmem:[%s2] sm:$0xff]
        %v196 = vld [vmem:[%s2 + $0x8] sm:$0xff]
        %v197 = vld [vmem:[%s2 + $0x10] sm:$0xff]
        %v198 = vld [vmem:[%s2 + $0x18] sm:$0xff]
        %v199 = vld [vmem:[%s2 + $0x20] sm:$0xff]
        %v200 = vld [vmem:[%s2 + $0x28] sm:$0xff]
        %v201 = vld [vmem:[%s2 + $0x30] sm:$0xff]
        %v202 = vld [vmem:[%s2 + $0x38] sm:$0xff]
        %vm203 = vcmask 523264
        %v205 = vsel %vm203, %v194, 0
        %207 = vmatprep.subr.mxu0 0.0
        %208 = vmatpush1.msra.mxu0 %v195
        %209 = vmatprep.subr.mxu0 0.0
        %210 = vmatpush1.msra.mxu0 %v196
        %211 = vmatprep.subr.mxu0 0.0
        %212 = vmatpush1.msra.mxu0 %v197
        %213 = vmatprep.subr.mxu0 0.0
        %214 = vmatpush1.msra.mxu0 %v198
        %215 = vmatprep.subr.mxu0 0.0
        %216 = vmatpush1.msra.mxu0 %v199
        %217 = vmatprep.subr.mxu0 0.0
        %218 = vmatpush1.msra.mxu0 %v200
        %219 = vmatprep.subr.mxu0 0.0
        %220 = vmatpush1.msra.mxu0 %v201
        %221 = vmatprep.subr.mxu0 0.0
        %222 = vmatpush1.msra.mxu0 %v202
        %223 = vmatprep.subr.mxu0 0.0
        %224 = vmatpush1.msra.mxu0 0.0
        %225 = vmatprep.subr.mxu0 0.0
        %226 = vmatpush1.msra.mxu0 0.0
        %227 = vmatprep.subr.mxu0 0.0
        %228 = vmatpush1.msra.mxu0 0.0
        %229 = vmatprep.subr.mxu0 0.0
        %230 = vmatpush1.msra.mxu0 0.0
        %231 = vmatprep.subr.mxu0 0.0
        %232 = vmatpush1.msra.mxu0 0.0
        %233 = vmatprep.subr.mxu0 0.0
        %234 = vmatpush1.msra.mxu0 0.0
        %235 = vmatprep.subr.mxu0 0.0
        %236 = vmatpush1.msra.mxu0 0.0
        %237 = vmatprep.subr.mxu0 0.0
        %238 = vmatpush1.msra.mxu0 0.0
        %239 = vmatprep.subr.mxu0 0.0
        %240 = vmatpush1.msra.mxu0 0.0
        %241 = vmatprep.subr.mxu0 0.0
        %242 = vmatpush1.msra.mxu0 0.0
        %243 = vmatprep.subr.mxu0 0.0
        %244 = vmatpush1.msra.mxu0 0.0
        %245 = vmatprep.subr.mxu0 0.0
        %246 = vmatpush1.msra.mxu0 0.0
        %247 = vmatprep.subr.mxu0 0.0
        %248 = vmatpush1.msra.mxu0 0.0
        %249 = vmatprep.subr.mxu0 0.0
        %250 = vmatpush1.msra.mxu0 0.0
        %251 = vmatprep.subr.mxu0 0.0
        %252 = vmatpush1.msra.mxu0 0.0
        %253 = vmatprep.subr.mxu0 0.0
        %254 = vmatpush1.msra.mxu0 0.0
        %255 = vmatprep.subr.mxu0 0.0
        %256 = vmatpush1.msra.mxu0 0.0
        %257 = vmatprep.subr.mxu0 0.0
        %258 = vmatpush1.msra.mxu0 0.0
        %259 = vmatprep.subr.mxu0 0.0
        %260 = vmatpush1.msra.mxu0 0.0
        %261 = vmatprep.subr.mxu0 0.0
        %262 = vmatpush1.msra.mxu0 0.0
        %263 = vmatprep.subr.mxu0 0.0
        %264 = vmatpush1.msra.mxu0 0.0
        %265 = vmatprep.subr.mxu0 0.0
        %266 = vmatpush1.msra.mxu0 0.0
        %267 = vmatprep.subr.mxu0 0.0
        %268 = vmatpush1.msra.mxu0 0.0
        %269 = vmatprep.subr.mxu0 0.0
        %270 = vmatpush1.msra.mxu0 0.0
        %271 = vmatprep.mubr.f32.mxu0 0.0
        %272 = vmatmul.mubr.f32.gmra.mrb[0].mxu0 %v205
        %v273 = vpop.f32.mrb[0].mxu0
        %v274 = vadd.f32 0.0, %v273
        %v275 = vpop.f32.mrb[0].mxu0
        %276 = vdwg.mxu0
        %278 = vset.pattern.permute.xlu0 0
        %279 = vperm.xlu0 %278, %v184
        %v280 = vpop.permute.xlu0 %279
        %v282 = vmul.f32 %v274, %v280
        %vm283 = vcmask 261120
        %284 = vst.msk [vmem:[%s174] sm:$0xff] %vm283, %v282
        %s285 = sand.u32 %s98, 1
        %s286 = scalar_lea.sflag [#allocation3], %s285
        %s287 = sand.u32 %s98, 1
        %s288 = smul.addr %s287, 8
        %s289 = scalar_lea.vmem [#allocation2], %s288
        // Predicated region
        $region33: #{tpu_custom_call.1} parent=31 // pred_check
          %p290 = pneg %p108
        $region34: #{tpu_custom_call.1} parent=31 // pred_check_branch
          %292 = sbr.rel (%p290) target = $region36
        $region35: #{tpu_custom_call.1} parent=31 // pred_region
          %s294 = ssub.s32 128, 128
          %295 = vsyncadd %s286, %s294
          %s296 = smul.addr %s17, 128
          %s297 = scalar_lea.hbm %s3, %s296
          %s299 = sshll.u32 %s289, 4
          %s300 = int_to_ptr.vmem [resolvable:$true] %s299
          %302 = dma.vmem_to_hbm [thread:$0]  %s300, 128, %s297, %s286
        $region36: #{tpu_custom_call.1} parent=31 // pred_fallthru
          _
      $region32: #{tpu_custom_call.1} parent=5 // pred_fallthru
        _
      %p303 = scmp.le.s32.totalorder 2, %s12
      // Predicated region
      $region37: #{tpu_custom_call.1} parent=5 // pred_check
        %p304 = pneg %p303
      $region38: #{tpu_custom_call.1} parent=5 // pred_check_branch
        %306 = sbr.rel (%p304) target = $region40
      $region39: #{tpu_custom_call.1} parent=5 // pred_region
        %s307 = ssub.s32 %s12, 2
        // Predicated region
        $region41: #{tpu_custom_call.1} parent=39 // pred_check
          %p308 = pneg %p114
        $region42: #{tpu_custom_call.1} parent=39 // pred_check_branch
          %310 = sbr.rel (%p308) target = $region44
        $region43: #{tpu_custom_call.1} parent=39 // pred_region
          %s311 = sand.u32 %s99, 1
          %s312 = scalar_lea.sflag [#allocation3], %s311
          %s313 = sand.u32 %s99, 1
          %s314 = smul.addr %s313, 8
          %s315 = scalar_lea.vmem [#allocation2], %s314
          %316 = dma.done %s312, 128
        $region44: #{tpu_custom_call.1} parent=39 // pred_fallthru
          _
      $region40: #{tpu_custom_call.1} parent=5 // pred_fallthru
        _
    $region6: #{tpu_custom_call.1} parent=1 // loop_footer
      %s16 = sadd.s32 1, %s12
    $region7: #{tpu_custom_call.1} parent=1 // loop_footer_branch
      %11 = sbr.rel target = $region3
    $region8: #{tpu_custom_call.1} parent=1 // loop_exit
      _
    %317 = vsyncpa [#allocation3], 1
    %s318 = scalar_lea.sflag [#allocation3], 1
    %319 = vsyncpa %s318, 1

</llo_original>
